<compile_context>
chip_gen: v5e
topology: v5e:2x2
jax: 0.10.0
libtpu: 0.0.40
codegen_flags: <defaults>
</compile_context>

<pallas_src>
import math

import jax
import jax.numpy as jnp
from jax.experimental import pallas as pl
from jax.experimental.pallas import tpu as pltpu


def _round_up(v, m):
    return -(-v // m) * m


ROW_ALIGN = 16  # sublane alignment for bf16-packed rows


# -----------------------------------------------------------------------------
# Parameters (mirrors Encoder.__init__ with PyTorch nn.Linear-style init).
# -----------------------------------------------------------------------------
def init_linear(key, in_size, out_size):
    kw, kb = jax.random.split(key)
    bound = 1.0 / math.sqrt(in_size)
    # PyTorch convention (out, in); transposed when packing.
    w = jax.random.uniform(kw, (out_size, in_size), jnp.float32, -bound, bound)
    b = jax.random.uniform(kb, (out_size,), jnp.float32, -bound, bound)
    return w, b


class EncoderParams:
    def __init__(self, key, layer_sizes, latent_size, conditional, num_labels):
        layer_sizes = list(layer_sizes)
        self.conditional = conditional
        self.data_size = layer_sizes[0]       # feature width of y (pre-concat)
        self.num_labels = num_labels
        if conditional:
            layer_sizes[0] += num_labels
        self.layer_sizes = layer_sizes
        self.latent_size = latent_size

        keys = jax.random.split(key, len(layer_sizes) - 1 + 2)
        self.mlp = []
        for i, (in_s, out_s) in enumerate(zip(layer_sizes[:-1], layer_sizes[1:])):
            self.mlp.append(init_linear(keys[i], in_s, out_s))
        self.means = init_linear(keys[-2], layer_sizes[-1], latent_size)
        self.log_var = init_linear(keys[-1], layer_sizes[-1], latent_size)


# -----------------------------------------------------------------------------
# Pack every weight / bias into ONE (rows, c_max) slab (default bf16).
#   * columns zero-padded to c_max = round_up(max out width, 128) lanes
#   * hidden-layer / head weights have their rows zero-padded to c_max so the
#     128-lane-wide activations multiply them directly (padded lanes are zero
#     and padded weight rows are zero, so the result is exact)
#   * each entry starts at a 16-row-aligned offset
# layout[name] = row_offset in the slab.
# -----------------------------------------------------------------------------
def pack_params(p: EncoderParams, param_dtype=jnp.bfloat16):
    c_max = _round_up(max(list(p.layer_sizes[1:]) + [2 * p.latent_size]), 128)

    entries = []  # (name, matrix)
    w0, b0 = p.mlp[0]
    w0t = w0.T                                   # (in, out)
    entries.append(("w0_y", w0t[: p.data_size, :]))
    if p.conditional:
        entries.append(("w0_x", w0t[p.data_size:, :]))
    entries.append(("b0", b0.reshape(1, -1)))
    for li, (w, b) in enumerate(p.mlp[1:], start=1):
        wt = w.T
        wt_p = jnp.zeros((c_max, wt.shape[1]), jnp.float32).at[: wt.shape[0]].set(wt)
        entries.append((f"w{li}", wt_p))
        entries.append((f"b{li}", b.reshape(1, -1)))
    wm, bm = p.means
    wv, bv = p.log_var
    wh = jnp.concatenate([wm.T, wv.T], axis=1)   # (hidden_last, 2*latent) fused heads
    wh_p = jnp.zeros((c_max, wh.shape[1]), jnp.float32).at[: wh.shape[0]].set(wh)
    entries.append(("w_heads", wh_p))
    entries.append(("b_heads", jnp.concatenate([bm, bv]).reshape(1, -1)))

    layout = {}
    blocks = []
    row = 0
    for name, m in entries:
        r, c = int(m.shape[0]), int(m.shape[1])
        r_pad = _round_up(r, ROW_ALIGN)
        layout[name] = row
        blk = jnp.zeros((r_pad, c_max), jnp.float32).at[:r, :c].set(
            m.astype(jnp.float32))
        blocks.append(blk)
        row += r_pad
    packed = jnp.concatenate(blocks, axis=0).astype(param_dtype)
    return packed, layout, c_max


# -----------------------------------------------------------------------------
# Fused kernel: layer 0 (with in-kernel concat via a VPU label accumulate),
# hidden tanh layers at full 128-lane width, fused mu/log_var head, one
# lane-dense (tile_b, c_max) store.
# -----------------------------------------------------------------------------
def make_encoder_kernel(layout, num_mlp, conditional, num_labels, data_size,
                        c_max, label_vpu):
    def kernel(*refs):
        if conditional:
            y_ref, x_ref, p_ref, out_ref = refs
        else:
            y_ref, p_ref, out_ref = refs
            x_ref = None

        def wmat(name, rows):
            r0 = layout[name]
            return p_ref[r0:r0 + rows, :]            # static, full lane width

        def bias(name):
            r0 = layout[name]
            return p_ref[r0:r0 + 1, :].astype(jnp.float32)

        # ---- layer 0: tanh(y @ W0_y + x-part + b0), concat fused away ----
        yb = y_ref[...].astype(jnp.bfloat16)
        h = jnp.dot(yb, wmat("w0_y", data_size),
                    preferred_element_type=jnp.float32)
        if conditional:
            if label_vpu:
                # K=num_labels matmul -> a few VPU FMAs (frees the MXU pass)
                r0x = layout["w0_x"]
                w0x = p_ref[r0x:r0x + _round_up(num_labels, ROW_ALIGN), :]
                w0x = w0x.astype(jnp.float32)
                xv = x_ref[...].astype(jnp.float32)
                for k in range(num_labels):
                    h = h + xv[:, k:k + 1] * w0x[k:k + 1, :]
            else:
                h = h + jnp.dot(x_ref[...].astype(jnp.bfloat16),
                                wmat("w0_x", num_labels),
                                preferred_element_type=jnp.float32)
        h = jnp.tanh(h + bias("b0"))                  # padded lanes stay 0

        # ---- hidden layers, all (tile_b, c_max) x (c_max, c_max) ----
        for li in range(1, num_mlp):
            h = jnp.tanh(
                jnp.dot(h.astype(jnp.bfloat16), wmat(f"w{li}", c_max),
                        preferred_element_type=jnp.float32)
                + bias(f"b{li}"))

        # ---- fused heads: one matmul, one lane-dense store ----
        out_ref[...] = (
            jnp.dot(h.astype(jnp.bfloat16), wmat("w_heads", c_max),
                    preferred_element_type=jnp.float32)
            + bias("b_heads"))

    return kernel


# -----------------------------------------------------------------------------
# Wrapper: builds the pallas_call with a batch grid when needed.
# -----------------------------------------------------------------------------
def build_encoder(params: EncoderParams, max_batch_tile=1024,
                  param_dtype=jnp.bfloat16):
    packed, layout, c_max = pack_params(params, param_dtype)
    conditional = params.conditional
    num_mlp = len(params.mlp)
    latent = params.latent_size
    two_latent = 2 * latent
    num_labels = params.num_labels if conditional else 0
    label_vpu = conditional and num_labels <= 8
    kernel = make_encoder_kernel(layout, num_mlp, conditional, num_labels,
                                 params.data_size, c_max, label_vpu)

    # static per-row cost model (layer_sizes[0] already includes the labels)
    flops_per_row = 0
    for in_s, out_s in zip(params.layer_sizes[:-1], params.layer_sizes[1:]):
        flops_per_row += 2 * in_s * out_s
    flops_per_row += 2 * params.layer_sizes[-1] * two_latent
    trans_per_row = sum(params.layer_sizes[1:])
    param_bytes = int(packed.size) * packed.dtype.itemsize

    @jax.jit
    def forward(y, x=None):
        batch, d = y.shape
        lab = x.shape[1] if conditional else 0

        if batch <= max_batch_tile:
            tile_b, padded = batch, batch             # single un-gridded block
        else:
            tile_b = max_batch_tile
            padded = _round_up(batch, tile_b)

        yp = y if padded == batch else jnp.pad(y, ((0, padded - batch), (0, 0)))
        operands = [yp]
        in_specs = [pl.BlockSpec((tile_b, d), lambda i: (i, 0))]
        if conditional:
            xp = x if padded == batch else jnp.pad(
                x, ((0, padded - batch), (0, 0)))
            operands.append(xp)
            in_specs.append(pl.BlockSpec((tile_b, lab), lambda i: (i, 0)))
        # parameter slab: same block for every grid step -> VMEM-resident
        operands.append(packed)
        in_specs.append(pl.BlockSpec(packed.shape, lambda i: (0, 0)))

        cost = pl.CostEstimate(
            flops=flops_per_row * padded,
            transcendentals=trans_per_row * padded,
            bytes_accessed=param_bytes + 4 * padded * (d + lab + c_max),
        )

        out = pl.pallas_call(
            kernel,
            out_shape=jax.ShapeDtypeStruct((padded, c_max), jnp.float32),
            grid=(padded // tile_b,),
            in_specs=in_specs,
            out_specs=pl.BlockSpec((tile_b, c_max), lambda i: (i, 0)),
            compiler_params=pltpu.CompilerParams(
                dimension_semantics=("parallel",)),
            cost_estimate=cost,
        )(*operands)

        mu = out[:batch, :latent]
        log_var = out[:batch, latent:two_latent]
        return mu, log_var

    return forward


# -----------------------------------------------------------------------------
# Pure-JAX references.
# -----------------------------------------------------------------------------
def reference_forward_f32(y, x, p: EncoderParams):
    """Exact f32 mirror of the PyTorch module."""
    if p.conditional:
        y = jnp.concatenate([y, x], axis=1)
    for w, b in p.mlp:
        y = jnp.tanh(y @ w.T + b)
    wm, bm = p.means
    wv, bv = p.log_var
    return y @ wm.T + bm, y @ wv.T + bv


def reference_forward_bf16(y, x, p: EncoderParams):
    """Mirror of the kernel's bf16-operand / f32-accumulate arithmetic."""
    def bdot(a, b):
        return jnp.dot(a.astype(jnp.bfloat16), b.astype(jnp.bfloat16),
                       preferred_element_type=jnp.float32)

    def bcast(a):
        return a.astype(jnp.bfloat16).astype(jnp.float32)

    w0, b0 = p.mlp[0]
    w0t = w0.T
    h = bdot(y, w0t[: p.data_size, :])
    if p.conditional:
        w0x = bcast(w0t[p.data_size:, :])
        for k in range(p.num_labels):
            h = h + x[:, k:k + 1] * w0x[k:k + 1, :]
    h = jnp.tanh(h + bcast(b0))
    for w, b in p.mlp[1:]:
        h = jnp.tanh(bdot(h, w.T) + bcast(b))
    wm, bm = p.means
    wv, bv = p.log_var
    return bdot(h, wm.T) + bcast(bm), bdot(h, wv.T) + bcast(bv)


if __name__ == "__main__":
    key = jax.random.PRNGKey(0)
    k_param, k_y, k_x, k_y2, k_x2 = jax.random.split(key, 5)

    layer_sizes = [32, 64, 32]   # layer_sizes[0] = data-feature width
    latent_size = 16
    conditional = True
    num_labels = 4

    params = EncoderParams(k_param, list(layer_sizes), latent_size,
                           conditional, num_labels)
    forward = build_encoder(params)

    def check(mu, lv, y, x):
        mu_b, lv_b = reference_forward_bf16(y, x, params)
        mu_f, lv_f = reference_forward_f32(y, x, params)
        # tight check against the matched bf16-arithmetic reference
        assert jnp.allclose(mu, mu_b, atol=1e-2, rtol=1e-2)
        assert jnp.allclose(lv, lv_b, atol=1e-2, rtol=1e-2)
        # loose check against the exact f32 module (bf16 weights/activations)
        assert jnp.allclose(mu, mu_f, atol=5e-2, rtol=5e-2)
        assert jnp.allclose(lv, lv_f, atol=5e-2, rtol=5e-2)

    # --- small batch: single un-gridded block ---------------------------------
    batch = 8
    y = jax.random.normal(k_y, (batch, layer_sizes[0]), jnp.float32)
    x = jax.nn.one_hot(
        jax.random.randint(k_x, (batch,), 0, num_labels), num_labels,
        dtype=jnp.float32)

    mu, log_var = forward(y, x)
    jax.block_until_ready((mu, log_var))
    check(mu, log_var, y, x)

    # --- larger, non-multiple batch: exercises the batch grid + padding path --
    batch2 = 1300
    y2 = jax.random.normal(k_y2, (batch2, layer_sizes[0]), jnp.float32)
    x2 = jax.nn.one_hot(
        jax.random.randint(k_x2, (batch2,), 0, num_labels), num_labels,
        dtype=jnp.float32)

    mu2, lv2 = forward(y2, x2)
    jax.block_until_ready((mu2, lv2))
    check(mu2, lv2, y2, x2)

    print("KERNEL_OK")
</pallas_src>

<mosaic_0001>
module attributes {stable_mosaic.version = 11 : i64} {
  func.func @kernel(%arg0: i32, %arg1: memref<8x32xf32, #tpu.memory_space<vmem>>, %arg2: memref<8x4xf32, #tpu.memory_space<vmem>>, %arg3: memref<352x128xbf16, #tpu.memory_space<vmem>>, %arg4: memref<8x128xf32, #tpu.memory_space<vmem>>) attributes {dimension_semantics = [#tpu.dimension_semantics<parallel>], iteration_bounds = array<i64: 1>, scalar_prefetch = 0 : i64, scratch_operands = 0 : i64, tpu.core_type = #tpu.core_type<tc>, window_params = [{transform_indices = @transform_0, window_bounds = array<i64: 8, 32>}, {transform_indices = @transform_1, window_bounds = array<i64: 8, 4>}, {pipeline_mode = #tpu.pipeline_mode<synchronous>, transform_indices = @transform_2, window_bounds = array<i64: 352, 128>}, {transform_indices = @transform_3, window_bounds = array<i64: 8, 128>}]} {
    %c0 = arith.constant 0 : index
    %c0_0 = arith.constant 0 : index
    %0 = vector.load %arg1[%c0, %c0_0] : memref<8x32xf32, #tpu.memory_space<vmem>>, vector<8x32xf32>
    %1 = arith.truncf %0 : vector<8x32xf32> to vector<8x32xbf16>
    %c0_1 = arith.constant 0 : index
    %c0_2 = arith.constant 0 : index
    %2 = vector.load %arg3[%c0_1, %c0_2] : memref<352x128xbf16, #tpu.memory_space<vmem>>, vector<32x128xbf16>
    %cst = arith.constant dense<0.000000e+00> : vector<8x128xf32>
    %3 = tpu.matmul %1, %2, %cst {dimension_numbers = #tpu.dot_dimension_numbers<[1], [0], [0], [1], [0, 0, 1, 1], [], []>} : vector<8x32xbf16>, vector<32x128xbf16>, vector<8x128xf32> -> vector<8x128xf32>
    %c32 = arith.constant 32 : index
    %c0_3 = arith.constant 0 : index
    %4 = vector.load %arg3[%c32, %c0_3] : memref<352x128xbf16, #tpu.memory_space<vmem>>, vector<16x128xbf16>
    %5 = arith.extf %4 : vector<16x128xbf16> to vector<16x128xf32>
    %c0_4 = arith.constant 0 : index
    %c0_5 = arith.constant 0 : index
    %6 = vector.load %arg2[%c0_4, %c0_5] : memref<8x4xf32, #tpu.memory_space<vmem>>, vector<8x4xf32>
    %7 = vector.extract_strided_slice %6 {offsets = [0, 0], sizes = [8, 1], strides = [1, 1]} : vector<8x4xf32> to vector<8x1xf32>
    %8 = vector.extract_strided_slice %5 {offsets = [0, 0], sizes = [1, 128], strides = [1, 1]} : vector<16x128xf32> to vector<1x128xf32>
    %9 = vector.broadcast %7 : vector<8x1xf32> to vector<8x128xf32>
    %10 = vector.broadcast %8 : vector<1x128xf32> to vector<8x128xf32>
    %11 = arith.mulf %9, %10 : vector<8x128xf32>
    %12 = arith.addf %3, %11 : vector<8x128xf32>
    %13 = vector.extract_strided_slice %6 {offsets = [0, 1], sizes = [8, 1], strides = [1, 1]} : vector<8x4xf32> to vector<8x1xf32>
    %14 = vector.extract_strided_slice %5 {offsets = [1, 0], sizes = [1, 128], strides = [1, 1]} : vector<16x128xf32> to vector<1x128xf32>
    %15 = vector.broadcast %13 : vector<8x1xf32> to vector<8x128xf32>
    %16 = vector.broadcast %14 : vector<1x128xf32> to vector<8x128xf32>
    %17 = arith.mulf %15, %16 : vector<8x128xf32>
    %18 = arith.addf %12, %17 : vector<8x128xf32>
    %19 = vector.extract_strided_slice %6 {offsets = [0, 2], sizes = [8, 1], strides = [1, 1]} : vector<8x4xf32> to vector<8x1xf32>
    %20 = vector.extract_strided_slice %5 {offsets = [2, 0], sizes = [1, 128], strides = [1, 1]} : vector<16x128xf32> to vector<1x128xf32>
    %21 = vector.broadcast %19 : vector<8x1xf32> to vector<8x128xf32>
    %22 = vector.broadcast %20 : vector<1x128xf32> to vector<8x128xf32>
    %23 = arith.mulf %21, %22 : vector<8x128xf32>
    %24 = arith.addf %18, %23 : vector<8x128xf32>
    %25 = vector.extract_strided_slice %6 {offsets = [0, 3], sizes = [8, 1], strides = [1, 1]} : vector<8x4xf32> to vector<8x1xf32>
    %26 = vector.extract_strided_slice %5 {offsets = [3, 0], sizes = [1, 128], strides = [1, 1]} : vector<16x128xf32> to vector<1x128xf32>
    %27 = vector.broadcast %25 : vector<8x1xf32> to vector<8x128xf32>
    %28 = vector.broadcast %26 : vector<1x128xf32> to vector<8x128xf32>
    %29 = arith.mulf %27, %28 : vector<8x128xf32>
    %30 = arith.addf %24, %29 : vector<8x128xf32>
    %c48 = arith.constant 48 : index
    %c0_6 = arith.constant 0 : index
    %31 = vector.load %arg3[%c48, %c0_6] : memref<352x128xbf16, #tpu.memory_space<vmem>>, vector<1x128xbf16>
    %32 = arith.extf %31 : vector<1x128xbf16> to vector<1x128xf32>
    %33 = vector.broadcast %32 : vector<1x128xf32> to vector<8x128xf32>
    %34 = arith.addf %30, %33 : vector<8x128xf32>
    %35 = math.tanh %34 : vector<8x128xf32>
    %36 = arith.truncf %35 : vector<8x128xf32> to vector<8x128xbf16>
    %c64 = arith.constant 64 : index
    %c0_7 = arith.constant 0 : index
    %37 = vector.load %arg3[%c64, %c0_7] : memref<352x128xbf16, #tpu.memory_space<vmem>>, vector<128x128xbf16>
    %cst_8 = arith.constant dense<0.000000e+00> : vector<8x128xf32>
    %38 = tpu.matmul %36, %37, %cst_8 {dimension_numbers = #tpu.dot_dimension_numbers<[1], [0], [0], [1], [0, 0, 1, 1], [], []>} : vector<8x128xbf16>, vector<128x128xbf16>, vector<8x128xf32> -> vector<8x128xf32>
    %c192 = arith.constant 192 : index
    %c0_9 = arith.constant 0 : index
    %39 = vector.load %arg3[%c192, %c0_9] : memref<352x128xbf16, #tpu.memory_space<vmem>>, vector<1x128xbf16>
    %40 = arith.extf %39 : vector<1x128xbf16> to vector<1x128xf32>
    %41 = vector.broadcast %40 : vector<1x128xf32> to vector<8x128xf32>
    %42 = arith.addf %38, %41 : vector<8x128xf32>
    %43 = math.tanh %42 : vector<8x128xf32>
    %44 = arith.truncf %43 : vector<8x128xf32> to vector<8x128xbf16>
    %c208 = arith.constant 208 : index
    %c0_10 = arith.constant 0 : index
    %45 = vector.load %arg3[%c208, %c0_10] : memref<352x128xbf16, #tpu.memory_space<vmem>>, vector<128x128xbf16>
    %cst_11 = arith.constant dense<0.000000e+00> : vector<8x128xf32>
    %46 = tpu.matmul %44, %45, %cst_11 {dimension_numbers = #tpu.dot_dimension_numbers<[1], [0], [0], [1], [0, 0, 1, 1], [], []>} : vector<8x128xbf16>, vector<128x128xbf16>, vector<8x128xf32> -> vector<8x128xf32>
    %c336 = arith.constant 336 : index
    %c0_12 = arith.constant 0 : index
    %47 = vector.load %arg3[%c336, %c0_12] : memref<352x128xbf16, #tpu.memory_space<vmem>>, vector<1x128xbf16>
    %48 = arith.extf %47 : vector<1x128xbf16> to vector<1x128xf32>
    %49 = vector.broadcast %48 : vector<1x128xf32> to vector<8x128xf32>
    %50 = arith.addf %46, %49 : vector<8x128xf32>
    %c0_13 = arith.constant 0 : index
    %c0_14 = arith.constant 0 : index
    %51 = vector.load %arg4[%c0_13, %c0_14] : memref<8x128xf32, #tpu.memory_space<vmem>>, vector<8x128xf32>
    tpu.vector_store %arg4[%c0_13, %c0_14], %50 {strides = array<i32>} : memref<8x128xf32, #tpu.memory_space<vmem>>, vector<8x128xf32>,
    return
  }
  func.func @transform_0(%arg0: i32) -> (i32, i32) {
    %c0_i32 = arith.constant 0 : i32
    %c0_i32_0 = arith.constant 0 : i32
    return %arg0, %c0_i32 : i32, i32
  }
  func.func @transform_1(%arg0: i32) -> (i32, i32) {
    %c0_i32 = arith.constant 0 : i32
    %c0_i32_0 = arith.constant 0 : i32
    return %arg0, %c0_i32 : i32, i32
  }
  func.func @transform_2(%arg0: i32) -> (i32, i32) {
    %c0_i32 = arith.constant 0 : i32
    %c0_i32_0 = arith.constant 0 : i32
    %c0_i32_1 = arith.constant 0 : i32
    return %c0_i32, %c0_i32_0 : i32, i32
  }
  func.func @transform_3(%arg0: i32) -> (i32, i32) {
    %c0_i32 = arith.constant 0 : i32
    %c0_i32_0 = arith.constant 0 : i32
    return %arg0, %c0_i32 : i32, i32
  }
}

</mosaic_0001>

<llo_original>
// kernel: forward.1
$region0: #{forward.1}
  #allocation0 [shape = 'u32[]', space=smem, size = 0x4, offset = 0x4, fixed_abs, tag = 'smem constant byte address 0x4 - core index']
  #allocation1 [shape = 'u32[72,128]{1,0:T(1,128)}', space=vmem, size = 0x9000, scoped, tag = 'internal scratch']
  %s0 = inlined_call_operand.vmem [shape: f32[8,32], index: 0, kind: input, shape index: {}]
  %s1 = inlined_call_operand.vmem [shape: f32[8,4], index: 1, kind: input, shape index: {}]
  %s2 = inlined_call_operand.hbm [shape: bf16[352,128], index: 2, kind: input, shape index: {}]
  %s3 = inlined_call_operand.vmem [shape: f32[8,128], index: 3, kind: output, shape index: {}]
  %s4 = sld [smem:[#allocation0]]
  $region26: #{forward.1} parent=0
    _
  %s6 = ssub.s32 1, %s4
  %s7 = scalar_select 0, %s6, %s4
  $region1: #{forward.1} parent=0
    #allocation2 [shape = 'u8[90112]{0}', space=vmem, size = 0x16000, scoped, tag = 'input window, operand 2, single buffered']
    #allocation3 [shape = 's32[1]{0}', space=sflag, size = 0x4, scoped, tag = 'scoped memory for forward.1']
    %8 = vsyncpa [#allocation3], 0
    // Predicated region
    $region2: #{forward.1} parent=1 // pred_check
      _
    $region3: #{forward.1} parent=1 // pred_check_branch
      %10 = sbr.rel (0) target = $region5
    $region4: #{forward.1} parent=1 // pred_region
      _
    $region5: #{forward.1} parent=1 // pred_fallthru
      _
    // Predicated region
    $region6: #{forward.1} parent=1 // pred_check
      _
    $region7: #{forward.1} parent=1 // pred_check_branch
      %12 = sbr.rel (0) target = $region9
    $region8: #{forward.1} parent=1 // pred_region
      _
    $region9: #{forward.1} parent=1 // pred_fallthru
      _
    // Predicated region
    $region10: #{forward.1} parent=1 // pred_check
      _
    $region11: #{forward.1} parent=1 // pred_check_branch
      %14 = sbr.rel (0) target = $region13
    $region12: #{forward.1} parent=1 // pred_region
      %16 = vsyncadd [#allocation3], 0
      %s17 = sshll.u32 %s2, 4
      %s18 = int_to_ptr.hbm [resolvable:$true] %s17
      %s19 = sshll.u32 [#allocation2], 4
      %s20 = int_to_ptr.vmem [resolvable:$true] %s19
      %25 = dma.hbm_to_vmem [thread:$0]  %s18, 2816, %s20, [#allocation3], 64, 64, 4
    $region13: #{forward.1} parent=1 // pred_fallthru
      _
    // Predicated region
    $region14: #{forward.1} parent=1 // pred_check
      _
    $region15: #{forward.1} parent=1 // pred_check_branch
      %27 = sbr.rel (0) target = $region17
    $region16: #{forward.1} parent=1 // pred_region
      %29 = dma.done [#allocation3], 2816
    $region17: #{forward.1} parent=1 // pred_fallthru
      _
    %v31 = vld [vmem:[%s0] sm:$0xff]
    %v32 = vpack.c.bf16 %v31, %v31
    %v33 = vld [vmem:[#allocation2] sm:$0xf]
    %v34 = vld [vmem:[#allocation2 + $0x4] sm:$0xf]
    %v35 = vld [vmem:[#allocation2 + $0x8] sm:$0xf]
    %v36 = vld [vmem:[#allocation2 + $0xc] sm:$0xf]
    %v37 = vld [vmem:[#allocation2 + $0x10] sm:$0xf]
    %v38 = vunpack.c.l.bf16 %v37
    %v39 = vld [vmem:[%s1] sm:$0xff]
    %41 = vset.pattern.permute.xlu0 0
    %42 = vperm.xlu0 %41, %v39
    %v43 = vpop.permute.xlu0 %42
    %v45 = vperm.slane %v38, 0
    %v46 = vmul.f32 %v43, %v45
    %v51 = vunpack.c.l.b16 %v33
    %v52 = vunpack.c.l.b16 %v34
    %v53 = vunpack.c.l.b16 %v35
    %v54 = vunpack.c.l.b16 %v36
    %v55 = vpack.c.b16 %v52, %v51
    %v56 = vpack.c.b16 %v54, %v53
    %vm59 = vcmask 261120
    %v61 = vsel %vm59, %v32, 0
    %63 = vmatpush.bf16.msra.mxu0 0
    %64 = vmatpush.bf16.msra.mxu0 0
    %65 = vmatpush.bf16.msra.mxu0 0
    %66 = vmatpush.bf16.msra.mxu0 0
    %67 = vmatpush.bf16.msra.mxu0 0
    %68 = vmatpush.bf16.msra.mxu0 0
    %69 = vmatpush.bf16.msra.mxu0 %v56
    %70 = vmatpush.bf16.msra.mxu0 %v55
    %71 = vmatmul.bf16.gmra.mxu0 %v61
    %v72 = vpop.f32.mrf.mxu0
    %v73 = vadd.f32 %v46, %v72
    %v74 = vpop.f32.mrf.mxu0
    %75 = vdwg.mxu0
    %76 = vset.pattern.permute.xlu0 1
    %77 = vperm.xlu0 %76, %v39
    %v78 = vpop.permute.xlu0 %77
    %v80 = vperm.slane %v38, 1
    %v81 = vmul.f32 %v78, %v80
    %v82 = vadd.f32 %v73, %v81
    %83 = vset.pattern.permute.xlu0 2
    %84 = vperm.xlu0 %83, %v39
    %v85 = vpop.permute.xlu0 %84
    %v87 = vperm.slane %v38, 2
    %v88 = vmul.f32 %v85, %v87
    %v89 = vadd.f32 %v82, %v88
    %90 = vset.pattern.permute.xlu0 3
    %91 = vperm.xlu0 %90, %v39
    %v92 = vpop.permute.xlu0 %91
    %v94 = vperm.slane %v38, 3
    %v95 = vmul.f32 %v92, %v94
    %v96 = vadd.f32 %v89, %v95
    %v97 = vld [vmem:[#allocation2 + $0x18] sm:$0x1]
    %v98 = vunpack.c.l.bf16 %v97
    %v99 = vperm.slane %v98, 0
    %v100 = vadd.f32 %v96, %v99
    %v101 = vtanh.pop %v100
    %v102 = vpack.c.bf16 %v101, %v101
    %v103 = vld [vmem:[#allocation2 + $0x20] sm:$0xf]
    %v104 = vld [vmem:[#allocation2 + $0x24] sm:$0xf]
    %v105 = vld [vmem:[#allocation2 + $0x28] sm:$0xf]
    %v106 = vld [vmem:[#allocation2 + $0x2c] sm:$0xf]
    %v107 = vld [vmem:[#allocation2 + $0x30] sm:$0xf]
    %v108 = vld [vmem:[#allocation2 + $0x34] sm:$0xf]
    %v109 = vld [vmem:[#allocation2 + $0x38] sm:$0xf]
    %v110 = vld [vmem:[#allocation2 + $0x3c] sm:$0xf]
    %v111 = vld [vmem:[#allocation2 + $0x40] sm:$0xf]
    %v112 = vld [vmem:[#allocation2 + $0x44] sm:$0xf]
    %v113 = vld [vmem:[#allocation2 + $0x48] sm:$0xf]
    %v114 = vld [vmem:[#allocation2 + $0x4c] sm:$0xf]
    %v115 = vld [vmem:[#allocation2 + $0x50] sm:$0xf]
    %v116 = vld [vmem:[#allocation2 + $0x54] sm:$0xf]
    %v117 = vld [vmem:[#allocation2 + $0x58] sm:$0xf]
    %v118 = vld [vmem:[#allocation2 + $0x5c] sm:$0xf]
    %v119 = vld [vmem:[#allocation2 + $0x60] sm:$0x1]
    %v120 = vunpack.c.l.bf16 %v119
    %v121 = vperm.slane %v120, 0
    %v138 = vunpack.c.l.b16 %v103
    %v139 = vunpack.c.l.b16 %v104
    %v140 = vunpack.c.l.b16 %v105
    %v141 = vunpack.c.l.b16 %v106
    %v142 = vunpack.c.l.b16 %v107
    %v143 = vunpack.c.l.b16 %v108
    %v144 = vunpack.c.l.b16 %v109
    %v145 = vunpack.c.l.b16 %v110
    %v146 = vunpack.c.l.b16 %v111
    %v147 = vunpack.c.l.b16 %v112
    %v148 = vunpack.c.l.b16 %v113
    %v149 = vunpack.c.l.b16 %v114
    %v150 = vunpack.c.l.b16 %v115
    %v151 = vunpack.c.l.b16 %v116
    %v152 = vunpack.c.l.b16 %v117
    %v153 = vunpack.c.l.b16 %v118
    %v154 = vpack.c.b16 %v139, %v138
    %v155 = vpack.c.b16 %v141, %v140
    %v156 = vpack.c.b16 %v143, %v142
    %v157 = vpack.c.b16 %v145, %v144
    %v158 = vpack.c.b16 %v147, %v146
    %v159 = vpack.c.b16 %v149, %v148
    %v160 = vpack.c.b16 %v151, %v150
    %v161 = vpack.c.b16 %v153, %v152
    %170 = vmatpush.bf16.msra.mxu0 %v161
    %171 = vmatpush.bf16.msra.mxu0 %v160
    %172 = vmatpush.bf16.msra.mxu0 %v159
    %173 = vmatpush.bf16.msra.mxu0 %v158
    %174 = vmatpush.bf16.msra.mxu0 %v157
    %175 = vmatpush.bf16.msra.mxu0 %v156
    %176 = vmatpush.bf16.msra.mxu0 %v155
    %177 = vmatpush.bf16.msra.mxu0 %v154
    %178 = vmatmul.bf16.gmra.mxu0 %v102
    %v179 = vpop.f32.mrf.mxu0
    %v180 = vadd.f32 %v121, %v179
    %v181 = vpop.f32.mrf.mxu0
    %182 = vdwg.mxu0
    %v183 = vtanh.pop %v180
    %v184 = vpack.c.bf16 %v183, %v183
    %v185 = vld [vmem:[#allocation2 + $0x68] sm:$0xf]
    %v186 = vld [vmem:[#allocation2 + $0x6c] sm:$0xf]
    %v187 = vld [vmem:[#allocation2 + $0x70] sm:$0xf]
    %v188 = vld [vmem:[#allocation2 + $0x74] sm:$0xf]
    %v189 = vld [vmem:[#allocation2 + $0x78] sm:$0xf]
    %v190 = vld [vmem:[#allocation2 + $0x7c] sm:$0xf]
    %v191 = vld [vmem:[#allocation2 + $0x80] sm:$0xf]
    %v192 = vld [vmem:[#allocation2 + $0x84] sm:$0xf]
    %v193 = vld [vmem:[#allocation2 + $0x88] sm:$0xf]
    %v194 = vld [vmem:[#allocation2 + $0x8c] sm:$0xf]
    %v195 = vld [vmem:[#allocation2 + $0x90] sm:$0xf]
    %v196 = vld [vmem:[#allocation2 + $0x94] sm:$0xf]
    %v197 = vld [vmem:[#allocation2 + $0x98] sm:$0xf]
    %v198 = vld [vmem:[#allocation2 + $0x9c] sm:$0xf]
    %v199 = vld [vmem:[#allocation2 + $0xa0] sm:$0xf]
    %v200 = vld [vmem:[#allocation2 + $0xa4] sm:$0xf]
    %v201 = vld [vmem:[#allocation2 + $0xa8] sm:$0x1]
    %v202 = vunpack.c.l.bf16 %v201
    %v203 = vperm.slane %v202, 0
    %v220 = vunpack.c.l.b16 %v185
    %v221 = vunpack.c.l.b16 %v186
    %v222 = vunpack.c.l.b16 %v187
    %v223 = vunpack.c.l.b16 %v188
    %v224 = vunpack.c.l.b16 %v189
    %v225 = vunpack.c.l.b16 %v190
    %v226 = vunpack.c.l.b16 %v191
    %v227 = vunpack.c.l.b16 %v192
    %v228 = vunpack.c.l.b16 %v193
    %v229 = vunpack.c.l.b16 %v194
    %v230 = vunpack.c.l.b16 %v195
    %v231 = vunpack.c.l.b16 %v196
    %v232 = vunpack.c.l.b16 %v197
    %v233 = vunpack.c.l.b16 %v198
    %v234 = vunpack.c.l.b16 %v199
    %v235 = vunpack.c.l.b16 %v200
    %v236 = vpack.c.b16 %v221, %v220
    %v237 = vpack.c.b16 %v223, %v222
    %v238 = vpack.c.b16 %v225, %v224
    %v239 = vpack.c.b16 %v227, %v226
    %v240 = vpack.c.b16 %v229, %v228
    %v241 = vpack.c.b16 %v231, %v230
    %v242 = vpack.c.b16 %v233, %v232
    %v243 = vpack.c.b16 %v235, %v234
    %252 = vmatpush.bf16.msra.mxu0 %v243
    %253 = vmatpush.bf16.msra.mxu0 %v242
    %254 = vmatpush.bf16.msra.mxu0 %v241
    %255 = vmatpush.bf16.msra.mxu0 %v240
    %256 = vmatpush.bf16.msra.mxu0 %v239
    %257 = vmatpush.bf16.msra.mxu0 %v238
    %258 = vmatpush.bf16.msra.mxu0 %v237
    %259 = vmatpush.bf16.msra.mxu0 %v236
    %260 = vmatmul.bf16.gmra.mxu0 %v184
    %v261 = vpop.f32.mrf.mxu0
    %v262 = vadd.f32 %v203, %v261
    %v263 = vpop.f32.mrf.mxu0
    %264 = vdwg.mxu0
    %265 = vst [vmem:[%s3] sm:$0xff] %v262
    // Predicated region
    $region18: #{forward.1} parent=1 // pred_check
      _
    $region19: #{forward.1} parent=1 // pred_check_branch
      %267 = sbr.rel (0) target = $region21
    $region20: #{forward.1} parent=1 // pred_region
      _
    $region21: #{forward.1} parent=1 // pred_fallthru
      _
    // Predicated region
    $region22: #{forward.1} parent=1 // pred_check
      _
    $region23: #{forward.1} parent=1 // pred_check_branch
      %269 = sbr.rel (0) target = $region25
    $region24: #{forward.1} parent=1 // pred_region
      _
    $region25: #{forward.1} parent=1 // pred_fallthru
      _
    %270 = vsyncpa [#allocation3], 1

</llo_original>
